<compile_context>
chip_gen: v7x
topology: tpu7x:2x2x1
jax: 0.10.0
libtpu: 0.0.40
codegen_flags: <defaults>
</compile_context>

<pallas_src>
import functools
from typing import NamedTuple

import jax
import jax.numpy as jnp
from jax.experimental import pallas as pl
from jax.experimental.pallas import tpu as pltpu

SQRT_2_OVER_PI = 0.7978845608028654


def _round_up(x, m):
    return ((x + m - 1) // m) * m


def _gelu_tanh_mul(gate_f32, up_f32):
    g = gate_f32
    t = jnp.tanh(SQRT_2_OVER_PI * (g + 0.044715 * g * g * g))
    return 0.5 * g * (1.0 + t) * up_f32


# --------------------------------------------------------------------------
# Kernels
# --------------------------------------------------------------------------
def _geglu_kernel_fullk(x_ref, w_ref, o_ref, *, tn):
    """Grid (M/tm, N/tn); full K in a single dot. No accumulator RMW, no k branch.

    w_ref is a packed (K_pad, 2*tn) block: [gate tile | up tile]. Matmul stays in
    the model dtype on the MXU; only the f32 accumulator + GELU epilogue are f32.
    """
    acc = jnp.dot(x_ref[...], w_ref[...], preferred_element_type=jnp.float32)
    gate = acc[:, :tn]          # 128-aligned static slices: no VMEM copies
    up = acc[:, tn:]
    o_ref[...] = _gelu_tanh_mul(gate, up).astype(o_ref.dtype)


def _geglu_kernel_ktiled(x_ref, w_ref, o_ref, acc_ref, *, tn):
    """Grid (M/tm, N/tn, K/tk), K innermost; f32 VMEM accumulator, epilogue at k==last."""
    k = pl.program_id(2)

    @pl.when(k == 0)
    def _():
        acc_ref[...] = jnp.zeros_like(acc_ref)

    acc_ref[...] += jnp.dot(
        x_ref[...], w_ref[...], preferred_element_type=jnp.float32
    )

    @pl.when(k == pl.num_programs(2) - 1)
    def _():
        acc = acc_ref[...]
        o_ref[...] = _gelu_tanh_mul(acc[:, :tn], acc[:, tn:]).astype(o_ref.dtype)


# --------------------------------------------------------------------------
# Generation-aware sizing
# --------------------------------------------------------------------------
def _tpu_hw_params():
    """(vmem_budget_bytes, two_tensorcores, prefer_256_m) with safe fallbacks."""
    vmem_cap = 64 << 20                      # conservative fallback (v7x per-TC)
    try:
        vmem_cap = int(pltpu.get_tpu_info().vmem_capacity_bytes)
    except Exception:
        pass
    kind = ""
    try:
        kind = (getattr(jax.devices()[0], "device_kind", "") or "").lower()
    except Exception:
        pass
    # Leave headroom for Mosaic internal scratch / semaphores; never request
    # the full physical VMEM (critical on v7x's 64 MiB/TC).
    budget = max(24 << 20, min(vmem_cap - (12 << 20), int(vmem_cap * 0.85)))
    old_gen = any(v in kind for v in ("v2", "v3", "v4", "v5"))
    prefer_256 = not old_gen                 # v6e / v7x: 2x256^2 MXU
    two_cores = "v7" in kind                 # v7x: 2 TensorCores share parallel axes
    return budget, two_cores, prefer_256


def _buffer_bytes(tm, tn, tk, in_itemsize, out_itemsize, full_k):
    """Actual VMEM footprint: double-buffered x/w/out (+ f32 acc if K is tiled)."""
    b = 2 * (tm * tk * in_itemsize + tk * 2 * tn * in_itemsize
             + tm * tn * out_itemsize)
    if not full_k:
        b += tm * 2 * tn * 4
    return b


def _select_tiles(M, dim_in, dim_out, dtype):
    budget, two_cores, prefer_256 = _tpu_hw_params()
    it = jnp.dtype(dtype).itemsize
    sub = max(8, 32 // it)                   # sublane packing: 8 f32 / 16 bf16

    m_align = 256 if (prefer_256 and M >= 256) else sub
    # For small/decode M this yields a single i block -> the packed weight
    # streams from HBM exactly once (the v5e floor).
    tm = min(_round_up(M, m_align), 1024 if it < 4 else 512)

    def pick(dim, cands):
        d_pad = _round_up(dim, 128)
        for c in cands:
            if c <= d_pad and d_pad % c == 0:
                return c
        return 128
    tn = pick(dim_out, (512, 256, 128))
    tk = pick(dim_in, (2048, 1024, 512, 256, 128))
    k_pad = _round_up(dim_in, tk)

    def fits(tm_, tn_, tk_, full_k):
        return _buffer_bytes(tm_, tn_, tk_, it, it, full_k) <= budget

    # Collapse the K reduction axis whenever the full-K tiles fit the per-gen
    # VMEM budget: one dot per output tile, no accumulator RMW, no k epilogue.
    if fits(tm, tn, k_pad, True):
        tk = k_pad
    else:
        # Keep tk >= 512 while tiled (accumulator RMW amortization); shrink
        # tn / tm only as a last resort.
        while not fits(tm, tn, tk, False):
            if tk > 512:
                tk //= 2
            elif tn > 128:
                tn //= 2
            elif tm > m_align:
                tm = max(m_align, _round_up(tm // 2, m_align))
            else:
                break

    if two_cores:
        # v7x megacore: make sure the parallel grid has >= 2 blocks.
        while (pl.cdiv(M, tm) * pl.cdiv(_round_up(dim_out, 128), tn)) < 2 and tn > 128:
            tn //= 2

    return tm, tn, tk


# --------------------------------------------------------------------------
# Weight packing (one-time, outside the hot path)
# --------------------------------------------------------------------------
class PackedGegluWeight(NamedTuple):
    w: jax.Array          # (K_pad, 2*N_pad): gate/up interleaved per tn-wide N tile
    dim_in: int
    dim_out: int
    tn: int
    tk: int


def pack_geglu_weight(weight, *, tn, tk, dtype):
    """Pack nn.Linear weight (2*dim_out, dim_in) into a single (K_pad, 2*N_pad)
    matrix, gate/up interleaved per tn-wide N tile. Do this ONCE at model load."""
    two_dim_out, dim_in = weight.shape
    dim_out = two_dim_out // 2
    n_pad = _round_up(dim_out, tn)
    k_pad = _round_up(dim_in, tk)

    wg = weight[:dim_out, :].T.astype(dtype)   # (dim_in, dim_out)
    wu = weight[dim_out:, :].T.astype(dtype)
    pad = ((0, k_pad - dim_in), (0, n_pad - dim_out))
    wg = jnp.pad(wg, pad)
    wu = jnp.pad(wu, pad)

    n_tiles = n_pad // tn
    packed = jnp.concatenate(
        [wg.reshape(k_pad, n_tiles, 1, tn), wu.reshape(k_pad, n_tiles, 1, tn)],
        axis=2,
    ).reshape(k_pad, 2 * n_pad)
    # TODO(synk): v7x fp8(e4m3) weight variant with per-tile scales (applied in
    # the f32 epilogue) would halve weight HBM traffic; not implemented here.
    return PackedGegluWeight(packed, dim_in, dim_out, tn, tk)


# --------------------------------------------------------------------------
# Forward
# --------------------------------------------------------------------------
def geglu_forward_packed(x, packed: PackedGegluWeight, *, tm=None):
    """x: (..., dim_in); packed from pack_geglu_weight (layout tied to its tn/tk)."""
    *lead, dim_in = x.shape
    assert dim_in == packed.dim_in, "packed weight built for a different dim_in"
    tn, tk, dim_out = packed.tn, packed.tk, packed.dim_out

    x2d = x.reshape(-1, dim_in)
    M = x2d.shape[0]

    budget, _, prefer_256 = _tpu_hw_params()
    it = jnp.dtype(x.dtype).itemsize
    if tm is None:
        m_align = 256 if (prefer_256 and M >= 256) else max(8, 32 // it)
        tm = min(_round_up(M, m_align), 1024 if it < 4 else 512)

    k_pad = _round_up(dim_in, tk)
    n_pad = _round_up(dim_out, tn)
    assert packed.w.shape == (k_pad, 2 * n_pad), "packed layout / tile mismatch"
    full_k = (k_pad == tk)

    m_pad = _round_up(M, tm)
    if m_pad != M or k_pad != dim_in:
        x2d = jnp.pad(x2d, ((0, m_pad - M), (0, k_pad - dim_in)))

    buf = _buffer_bytes(tm, tn, tk, it, it, full_k)
    vmem_limit = int(min(max(16 << 20, buf + (4 << 20)), budget + (8 << 20)))

    cost = pl.CostEstimate(
        flops=2 * M * dim_in * 2 * dim_out,
        transcendentals=M * dim_out,
        bytes_accessed=(M * dim_in * it + packed.w.size * it + M * dim_out * it),
    )

    if full_k:
        grid_spec = pltpu.PrefetchScalarGridSpec(
            num_scalar_prefetch=0,
            grid=(m_pad // tm, n_pad // tn),
            in_specs=[
                pl.BlockSpec((tm, k_pad), lambda i, j: (i, 0)),
                pl.BlockSpec((k_pad, 2 * tn), lambda i, j: (0, j)),
            ],
            out_specs=pl.BlockSpec((tm, tn), lambda i, j: (i, j)),
        )
        kernel = functools.partial(_geglu_kernel_fullk, tn=tn)
        dims = ("parallel", "parallel")
    else:
        grid_spec = pltpu.PrefetchScalarGridSpec(
            num_scalar_prefetch=0,
            grid=(m_pad // tm, n_pad // tn, k_pad // tk),
            in_specs=[
                pl.BlockSpec((tm, tk), lambda i, j, k: (i, k)),
                pl.BlockSpec((tk, 2 * tn), lambda i, j, k: (k, j)),
            ],
            out_specs=pl.BlockSpec((tm, tn), lambda i, j, k: (i, j)),
            scratch_shapes=[pltpu.VMEM((tm, 2 * tn), jnp.float32)],
        )
        kernel = functools.partial(_geglu_kernel_ktiled, tn=tn)
        dims = ("parallel", "parallel", "arbitrary")

    out = pl.pallas_call(
        kernel,
        out_shape=jax.ShapeDtypeStruct((m_pad, n_pad), x.dtype),
        grid_spec=grid_spec,
        compiler_params=pltpu.CompilerParams(
            dimension_semantics=dims,
            vmem_limit_bytes=vmem_limit,
        ),
        cost_estimate=cost,
    )(x2d, packed.w)

    out = out[:M, :dim_out]
    return out.reshape(*lead, dim_out)


def optimized_geglu(x, weight, *, tiles=None):
    """Convenience wrapper (re-packs the weight every call -- tests only).
    In a model, call pack_geglu_weight() once at load time (per generation,
    since the layout depends on tn) and use geglu_forward_packed() in the hot path.
    x:      (..., dim_in)
    weight: (2*dim_out, dim_in)  -- torch nn.Linear.weight layout.
    """
    *lead, dim_in = x.shape
    M = 1
    for d in lead:
        M *= d
    dim_out = weight.shape[0] // 2
    if tiles is None:
        tm, tn, tk = _select_tiles(M, dim_in, dim_out, x.dtype)
    else:
        tm, tn, tk = tiles
    packed = pack_geglu_weight(weight, tn=tn, tk=tk, dtype=x.dtype)
    return geglu_forward_packed(x, packed, tm=tm)


def _reference(x, weight):
    """Pure-JAX reference of the PyTorch module."""
    gate_up = jnp.einsum("...i,oi->...o", x, weight,
                         preferred_element_type=jnp.float32)
    dim_out = weight.shape[0] // 2
    gate, up = gate_up[..., :dim_out], gate_up[..., dim_out:]
    g = gate.astype(jnp.float32)
    t = jnp.tanh(SQRT_2_OVER_PI * (g + 0.044715 * g**3))
    return ((0.5 * g * (1.0 + t)) * up.astype(jnp.float32)).astype(x.dtype)


if __name__ == "__main__":
    key = jax.random.PRNGKey(0)
    kx, kw, kx2, kw2, kx3, kw3 = jax.random.split(key, 6)

    # --- 1) small shape, auto (generation-aware) tiles; K collapses -> fused kernel ---
    batch, seq, dim_in, dim_out = 2, 8, 32, 32
    x = jax.random.normal(kx, (batch, seq, dim_in), dtype=jnp.float32)
    w = jax.random.normal(kw, (2 * dim_out, dim_in), dtype=jnp.float32) * 0.05
    out = jax.block_until_ready(optimized_geglu(x, w))
    ref = _reference(x, w)
    assert out.shape == (batch, seq, dim_out)
    assert jnp.allclose(out, ref, atol=2e-2, rtol=2e-2), "mismatch (small shape)"

    # --- 2) padding + explicit small tiles: exercises the K-tiled accumulator path ---
    b2, s2, di2, do2 = 2, 56, 384, 320          # M=112->128, 3 K-tiles, 3 N-tiles
    x2 = jax.random.normal(kx2, (b2, s2, di2), dtype=jnp.float32)
    w2 = jax.random.normal(kw2, (2 * do2, di2), dtype=jnp.float32) * 0.03
    out2 = jax.block_until_ready(optimized_geglu(x2, w2, tiles=(64, 128, 128)))
    ref2 = _reference(x2, w2)
    assert out2.shape == (b2, s2, do2)
    assert jnp.allclose(out2, ref2, atol=2e-2, rtol=2e-2), "mismatch (tiled shape)"

    # --- 3) bf16 production-dtype smoke test with auto tiles ---
    b3, s3, di3, do3 = 4, 128, 512, 256
    x3 = jax.random.normal(kx3, (b3, s3, di3), dtype=jnp.float32).astype(jnp.bfloat16)
    w3 = (jax.random.normal(kw3, (2 * do3, di3), dtype=jnp.float32) * 0.02
          ).astype(jnp.bfloat16)
    out3 = jax.block_until_ready(optimized_geglu(x3, w3))
    ref3 = _reference(x3, w3)
    assert out3.shape == (b3, s3, do3)
    assert jnp.allclose(out3.astype(jnp.float32), ref3.astype(jnp.float32),
                        atol=5e-2, rtol=5e-2), "mismatch (bf16)"

    print("KERNEL_OK")
</pallas_src>

<mosaic_0001>
module attributes {stable_mosaic.version = 11 : i64} {
  func.func @_geglu_kernel_fullk(%arg0: i32, %arg1: i32, %arg2: memref<16x128xf32, #tpu.memory_space<vmem>>, %arg3: memref<128x256xf32, #tpu.memory_space<vmem>>, %arg4: memref<16x128xf32, #tpu.memory_space<vmem>>) attributes {dimension_semantics = [#tpu.dimension_semantics<parallel>, #tpu.dimension_semantics<parallel>], iteration_bounds = array<i64: 1, 1>, scalar_prefetch = 0 : i64, scratch_operands = 0 : i64, tpu.core_type = #tpu.core_type<tc>, window_params = [{transform_indices = @transform_0, window_bounds = array<i64: 16, 128>}, {transform_indices = @transform_1, window_bounds = array<i64: 128, 256>}, {transform_indices = @transform_2, window_bounds = array<i64: 16, 128>}]} {
    %c0 = arith.constant 0 : index
    %c0_0 = arith.constant 0 : index
    %0 = vector.load %arg2[%c0, %c0_0] : memref<16x128xf32, #tpu.memory_space<vmem>>, vector<16x128xf32>
    %c0_1 = arith.constant 0 : index
    %c0_2 = arith.constant 0 : index
    %1 = vector.load %arg3[%c0_1, %c0_2] : memref<128x256xf32, #tpu.memory_space<vmem>>, vector<128x256xf32>
    %cst = arith.constant dense<0.000000e+00> : vector<16x256xf32>
    %2 = tpu.matmul %0, %1, %cst {dimension_numbers = #tpu.dot_dimension_numbers<[1], [0], [0], [1], [0, 0, 1, 1], [], []>} : vector<16x128xf32>, vector<128x256xf32>, vector<16x256xf32> -> vector<16x256xf32>
    %3 = vector.extract_strided_slice %2 {offsets = [0, 0], sizes = [16, 128], strides = [1, 1]} : vector<16x256xf32> to vector<16x128xf32>
    %4 = vector.extract_strided_slice %2 {offsets = [0, 128], sizes = [16, 128], strides = [1, 1]} : vector<16x256xf32> to vector<16x128xf32>
    %cst_3 = arith.constant 4.471500e-02 : f32
    %5 = vector.broadcast %cst_3 : f32 to vector<16x128xf32>
    %6 = arith.mulf %5, %3 : vector<16x128xf32>
    %7 = arith.mulf %6, %3 : vector<16x128xf32>
    %8 = arith.mulf %7, %3 : vector<16x128xf32>
    %9 = arith.addf %3, %8 : vector<16x128xf32>
    %cst_4 = arith.constant 0.797884583 : f32
    %10 = vector.broadcast %cst_4 : f32 to vector<16x128xf32>
    %11 = arith.mulf %10, %9 : vector<16x128xf32>
    %12 = math.tanh %11 : vector<16x128xf32>
    %cst_5 = arith.constant 5.000000e-01 : f32
    %13 = vector.broadcast %cst_5 : f32 to vector<16x128xf32>
    %14 = arith.mulf %13, %3 : vector<16x128xf32>
    %cst_6 = arith.constant 1.000000e+00 : f32
    %15 = vector.broadcast %cst_6 : f32 to vector<16x128xf32>
    %16 = arith.addf %15, %12 : vector<16x128xf32>
    %17 = arith.mulf %14, %16 : vector<16x128xf32>
    %18 = arith.mulf %17, %4 : vector<16x128xf32>
    %c0_7 = arith.constant 0 : index
    %c0_8 = arith.constant 0 : index
    %19 = vector.load %arg4[%c0_7, %c0_8] : memref<16x128xf32, #tpu.memory_space<vmem>>, vector<16x128xf32>
    tpu.vector_store %arg4[%c0_7, %c0_8], %18 {strides = array<i32>} : memref<16x128xf32, #tpu.memory_space<vmem>>, vector<16x128xf32>,
    return
  }
  func.func @transform_0(%arg0: i32, %arg1: i32) -> (i32, i32) {
    %c0_i32 = arith.constant 0 : i32
    %c0_i32_0 = arith.constant 0 : i32
    return %arg0, %c0_i32 : i32, i32
  }
  func.func @transform_1(%arg0: i32, %arg1: i32) -> (i32, i32) {
    %c0_i32 = arith.constant 0 : i32
    %c0_i32_0 = arith.constant 0 : i32
    return %c0_i32, %arg1 : i32, i32
  }
  func.func @transform_2(%arg0: i32, %arg1: i32) -> (i32, i32) {
    %c0_i32 = arith.constant 0 : i32
    return %arg0, %arg1 : i32, i32
  }
}

</mosaic_0001>

<llo_original>
// kernel: tpu_custom_call.1
$region0: #{tpu_custom_call.1}
  #allocation0 [shape = 'u32[]', space=smem, size = 0x4, offset = 0x4, fixed_abs, tag = 'smem constant byte address 0x4 - core index']
  #allocation1 [shape = 'u32[144,128]{1,0:T(1,128)}', space=vmem, size = 0x12000, scoped, tag = 'internal scratch']
  %s0 = inlined_call_operand.hbm [shape: f32[16,128], index: 0, kind: input, shape index: {}]
  %s1 = inlined_call_operand.hbm [shape: f32[128,256], index: 1, kind: input, shape index: {}]
  %s2 = inlined_call_operand.hbm [shape: f32[16,128], index: 2, kind: output, shape index: {}]
  %s3 = sld [smem:[#allocation0]]
  $region26: #{tpu_custom_call.1} parent=0
    _
  %s5 = ssub.s32 1, %s3
  %s6 = scalar_select 0, %s5, %s3
  $region1: #{tpu_custom_call.1} parent=0
    #allocation2 [shape = 'u8[8192]{0}', space=vmem, size = 0x2000, scoped, tag = 'input window, operand 0, single buffered']
    #allocation3 [shape = 's32[1]{0}', space=sflag, size = 0x4, scoped, tag = 'scoped memory for tpu_custom_call.1']
    #allocation4 [shape = 's32[1]{0}', space=sflag, size = 0x4, scoped, tag = 'scoped memory for tpu_custom_call.1']
    #allocation5 [shape = 'u8[131072]{0}', space=vmem, size = 0x20000, scoped, tag = 'input window, operand 1, single buffered']
    #allocation6 [shape = 's32[1]{0}', space=sflag, size = 0x4, scoped, tag = 'scoped memory for tpu_custom_call.1']
    #allocation7 [shape = 'u8[8192]{0}', space=vmem, size = 0x2000, scoped, tag = 'output window, operand 0, single buffered']
    %7 = vsyncpa [#allocation3], 0
    %8 = vsyncpa [#allocation6], 0
    %9 = vsyncpa [#allocation4], 0
    // Predicated region
    $region2: #{tpu_custom_call.1} parent=1 // pred_check
      _
    $region3: #{tpu_custom_call.1} parent=1 // pred_check_branch
      %11 = sbr.rel (0) target = $region5
    $region4: #{tpu_custom_call.1} parent=1 // pred_region
      %s13 = ssub.s32 256, 256
      %14 = vsyncadd [#allocation3], %s13
      %s15 = sshll.u32 [#allocation2], 4
      %s16 = int_to_ptr.vmem [resolvable:$true] %s15
      %21 = dma.hbm_to_vmem [thread:$0]  %s0, 256, %s16, [#allocation3], 128, 128, 8
    $region5: #{tpu_custom_call.1} parent=1 // pred_fallthru
      _
    // Predicated region
    $region6: #{tpu_custom_call.1} parent=1 // pred_check
      _
    $region7: #{tpu_custom_call.1} parent=1 // pred_check_branch
      %23 = sbr.rel (0) target = $region9
    $region8: #{tpu_custom_call.1} parent=1 // pred_region
      %s25 = ssub.s32 4096, 4096
      %26 = vsyncadd [#allocation6], %s25
      %s27 = sshll.u32 [#allocation5], 4
      %s28 = int_to_ptr.vmem [resolvable:$true] %s27
      %33 = dma.hbm_to_vmem [thread:$0]  %s1, 4096, %s28, [#allocation6], 256, 256, 16
    $region9: #{tpu_custom_call.1} parent=1 // pred_fallthru
      _
    // Predicated region
    $region10: #{tpu_custom_call.1} parent=1 // pred_check
      _
    $region11: #{tpu_custom_call.1} parent=1 // pred_check_branch
      %35 = sbr.rel (0) target = $region13
    $region12: #{tpu_custom_call.1} parent=1 // pred_region
      %36 = dma.done [#allocation3], 256
    $region13: #{tpu_custom_call.1} parent=1 // pred_fallthru
      _
    // Predicated region
    $region14: #{tpu_custom_call.1} parent=1 // pred_check
      _
    $region15: #{tpu_custom_call.1} parent=1 // pred_check_branch
      %38 = sbr.rel (0) target = $region17
    $region16: #{tpu_custom_call.1} parent=1 // pred_region
      %39 = dma.done [#allocation6], 4096
    $region17: #{tpu_custom_call.1} parent=1 // pred_fallthru
      _
    %v40 = vld [vmem:[#allocation2] sm:$0xff]
    %v41 = vld [vmem:[#allocation2 + $0x8] sm:$0xff]
    %v42 = vld [vmem:[#allocation5] sm:$0xff]
    %v43 = vld [vmem:[#allocation5 + $0x8] sm:$0xff]
    %v44 = vld [vmem:[#allocation5 + $0x10] sm:$0xff]
    %v45 = vld [vmem:[#allocation5 + $0x18] sm:$0xff]
    %v46 = vld [vmem:[#allocation5 + $0x20] sm:$0xff]
    %v47 = vld [vmem:[#allocation5 + $0x28] sm:$0xff]
    %v48 = vld [vmem:[#allocation5 + $0x30] sm:$0xff]
    %v49 = vld [vmem:[#allocation5 + $0x38] sm:$0xff]
    %v50 = vld [vmem:[#allocation5 + $0x40] sm:$0xff]
    %v51 = vld [vmem:[#allocation5 + $0x48] sm:$0xff]
    %v52 = vld [vmem:[#allocation5 + $0x50] sm:$0xff]
    %v53 = vld [vmem:[#allocation5 + $0x58] sm:$0xff]
    %v54 = vld [vmem:[#allocation5 + $0x60] sm:$0xff]
    %v55 = vld [vmem:[#allocation5 + $0x68] sm:$0xff]
    %v56 = vld [vmem:[#allocation5 + $0x70] sm:$0xff]
    %v57 = vld [vmem:[#allocation5 + $0x78] sm:$0xff]
    %v58 = vld [vmem:[#allocation5 + $0x80] sm:$0xff]
    %v59 = vld [vmem:[#allocation5 + $0x88] sm:$0xff]
    %v60 = vld [vmem:[#allocation5 + $0x90] sm:$0xff]
    %v61 = vld [vmem:[#allocation5 + $0x98] sm:$0xff]
    %v62 = vld [vmem:[#allocation5 + $0xa0] sm:$0xff]
    %v63 = vld [vmem:[#allocation5 + $0xa8] sm:$0xff]
    %v64 = vld [vmem:[#allocation5 + $0xb0] sm:$0xff]
    %v65 = vld [vmem:[#allocation5 + $0xb8] sm:$0xff]
    %v66 = vld [vmem:[#allocation5 + $0xc0] sm:$0xff]
    %v67 = vld [vmem:[#allocation5 + $0xc8] sm:$0xff]
    %v68 = vld [vmem:[#allocation5 + $0xd0] sm:$0xff]
    %v69 = vld [vmem:[#allocation5 + $0xd8] sm:$0xff]
    %v70 = vld [vmem:[#allocation5 + $0xe0] sm:$0xff]
    %v71 = vld [vmem:[#allocation5 + $0xe8] sm:$0xff]
    %v72 = vld [vmem:[#allocation5 + $0xf0] sm:$0xff]
    %v73 = vld [vmem:[#allocation5 + $0xf8] sm:$0xff]
    %74 = vmatprep.subr.mxu0 %v43
    %75 = vmatpush1.msra.mxu0 %v42
    %76 = vmatprep.subr.mxu0 %v45
    %77 = vmatpush1.msra.mxu0 %v44
    %78 = vmatprep.subr.mxu0 %v47
    %79 = vmatpush1.msra.mxu0 %v46
    %80 = vmatprep.subr.mxu0 %v49
    %81 = vmatpush1.msra.mxu0 %v48
    %82 = vmatprep.subr.mxu0 %v51
    %83 = vmatpush1.msra.mxu0 %v50
    %84 = vmatprep.subr.mxu0 %v53
    %85 = vmatpush1.msra.mxu0 %v52
    %86 = vmatprep.subr.mxu0 %v55
    %87 = vmatpush1.msra.mxu0 %v54
    %88 = vmatprep.subr.mxu0 %v57
    %89 = vmatpush1.msra.mxu0 %v56
    %90 = vmatprep.subr.mxu0 %v59
    %91 = vmatpush1.msra.mxu0 %v58
    %92 = vmatprep.subr.mxu0 %v61
    %93 = vmatpush1.msra.mxu0 %v60
    %94 = vmatprep.subr.mxu0 %v63
    %95 = vmatpush1.msra.mxu0 %v62
    %96 = vmatprep.subr.mxu0 %v65
    %97 = vmatpush1.msra.mxu0 %v64
    %98 = vmatprep.subr.mxu0 %v67
    %99 = vmatpush1.msra.mxu0 %v66
    %100 = vmatprep.subr.mxu0 %v69
    %101 = vmatpush1.msra.mxu0 %v68
    %102 = vmatprep.subr.mxu0 %v71
    %103 = vmatpush1.msra.mxu0 %v70
    %104 = vmatprep.subr.mxu0 %v73
    %105 = vmatpush1.msra.mxu0 %v72
    %106 = vmatprep.subr.mxu0 0.0
    %107 = vmatpush1.msra.mxu0 0.0
    %108 = vmatprep.subr.mxu0 0.0
    %109 = vmatpush1.msra.mxu0 0.0
    %110 = vmatprep.subr.mxu0 0.0
    %111 = vmatpush1.msra.mxu0 0.0
    %112 = vmatprep.subr.mxu0 0.0
    %113 = vmatpush1.msra.mxu0 0.0
    %114 = vmatprep.subr.mxu0 0.0
    %115 = vmatpush1.msra.mxu0 0.0
    %116 = vmatprep.subr.mxu0 0.0
    %117 = vmatpush1.msra.mxu0 0.0
    %118 = vmatprep.subr.mxu0 0.0
    %119 = vmatpush1.msra.mxu0 0.0
    %120 = vmatprep.subr.mxu0 0.0
    %121 = vmatpush1.msra.mxu0 0.0
    %122 = vmatprep.subr.mxu0 0.0
    %123 = vmatpush1.msra.mxu0 0.0
    %124 = vmatprep.subr.mxu0 0.0
    %125 = vmatpush1.msra.mxu0 0.0
    %126 = vmatprep.subr.mxu0 0.0
    %127 = vmatpush1.msra.mxu0 0.0
    %128 = vmatprep.subr.mxu0 0.0
    %129 = vmatpush1.msra.mxu0 0.0
    %130 = vmatprep.subr.mxu0 0.0
    %131 = vmatpush1.msra.mxu0 0.0
    %132 = vmatprep.subr.mxu0 0.0
    %133 = vmatpush1.msra.mxu0 0.0
    %134 = vmatprep.subr.mxu0 0.0
    %135 = vmatpush1.msra.mxu0 0.0
    %136 = vmatprep.subr.mxu0 0.0
    %137 = vmatpush1.msra.mxu0 0.0
    %138 = vmatprep.mubr.f32.mxu0 0.0
    %139 = vmatmul.mubr.f32.gmra.mrb[0].mxu0 %v40
    %v140 = vpop.f32.mrb[0].mxu0
    %v141 = vadd.f32 0.0, %v140
    %v142 = vpop.f32.mrb[0].mxu0
    %v143 = vadd.f32 0.0, %v142
    %144 = vmatprep.mubr.f32.mxu0 0.0
    %145 = vmatmul.mubr.f32.gmra.mrb[0].mxu0 %v41
    %v146 = vpop.f32.mrb[0].mxu0
    %v147 = vadd.f32 0.0, %v146
    %v148 = vpop.f32.mrb[0].mxu0
    %v149 = vadd.f32 0.0, %v148
    %150 = vdwg.mxu0
    %v151 = vmul.f32 %v141, 0.044715
    %v152 = vmul.f32 %v147, 0.044715
    %v153 = vmul.f32 %v151, %v141
    %v154 = vmul.f32 %v152, %v147
    %v155 = vmul.f32 %v153, %v141
    %v156 = vmul.f32 %v154, %v147
    %v157 = vadd.f32 %v141, %v155
    %v158 = vadd.f32 %v147, %v156
    %v159 = vmul.f32 %v157, 0.7978846
    %v160 = vmul.f32 %v158, 0.7978846
    %v161 = vtanh.pop %v159
    %v162 = vtanh.pop %v160
    %v163 = vmul.f32 %v141, 0.5
    %v164 = vmul.f32 %v147, 0.5
    %v165 = vadd.f32 %v161, 1.0
    %v166 = vadd.f32 %v162, 1.0
    %v167 = vmul.f32 %v163, %v165
    %v168 = vmul.f32 %v164, %v166
    %v169 = vmul.f32 %v167, %v143
    %v170 = vmul.f32 %v168, %v149
    %171 = vst [vmem:[#allocation7] sm:$0xff] %v169
    %172 = vst [vmem:[#allocation7 + $0x8] sm:$0xff] %v170
    // Predicated region
    $region18: #{tpu_custom_call.1} parent=1 // pred_check
      _
    $region19: #{tpu_custom_call.1} parent=1 // pred_check_branch
      %174 = sbr.rel (0) target = $region21
    $region20: #{tpu_custom_call.1} parent=1 // pred_region
      %s176 = ssub.s32 256, 256
      %177 = vsyncadd [#allocation4], %s176
      %s178 = sshll.u32 [#allocation7], 4
      %s179 = int_to_ptr.vmem [resolvable:$true] %s178
      %184 = dma.vmem_to_hbm [thread:$0]  %s179, 256, %s2, [#allocation4], 128, 128, 8
    $region21: #{tpu_custom_call.1} parent=1 // pred_fallthru
      _
    // Predicated region
    $region22: #{tpu_custom_call.1} parent=1 // pred_check
      _
    $region23: #{tpu_custom_call.1} parent=1 // pred_check_branch
      %186 = sbr.rel (0) target = $region25
    $region24: #{tpu_custom_call.1} parent=1 // pred_region
      %187 = dma.done [#allocation4], 256
    $region25: #{tpu_custom_call.1} parent=1 // pred_fallthru
      _
    %188 = vsyncpa [#allocation3], 1
    %189 = vsyncpa [#allocation6], 1
    %190 = vsyncpa [#allocation4], 1

</llo_original>
